<compile_context>
chip_gen: v7x
topology: tpu7x:2x2x1
jax: 0.10.0
libtpu: 0.0.40
codegen_flags: <defaults>
</compile_context>

<pallas_src>
import functools

import jax
import jax.numpy as jnp
from jax.experimental import pallas as pl
from jax.experimental.pallas import tpu as pltpu


# -----------------------------------------------------------------------------
# Pallas kernel: tiled  y = (x @ W^T + bias) * mask   (mask zeroes out columns)
# -----------------------------------------------------------------------------
def neuron_popup_kernel(x_ref, w_ref, b_ref, m_ref, o_ref, acc_ref):
    # x_ref : (tm, tk)   w_ref : (tn, tk)   b_ref/m_ref : (1, tn)
    # o_ref : (tm, tn)   acc_ref : (tm, tn) f32 scratch (resident across K)
    ks = pl.program_id(2)

    @pl.when(ks == 0)
    def _():
        acc_ref[...] = jnp.zeros_like(acc_ref)

    # Contract x's last dim with w's last dim (weight stays [Out, In]; no
    # transpose materialized -- MXU handles the transposed operand natively).
    acc_ref[...] += jax.lax.dot_general(
        x_ref[...], w_ref[...],
        dimension_numbers=(((1,), (1,)), ((), ())),
        preferred_element_type=jnp.float32,
    )

    @pl.when(ks == pl.num_programs(2) - 1)
    def _():
        # Mask whole output columns (equivalent to masking W rows + bias).
        o_ref[...] = ((acc_ref[...] + b_ref[...]) * m_ref[...]).astype(o_ref.dtype)


def _round_up(x, m):
    return (x + m - 1) // m * m


def _pad2d(a, shape):
    if a.shape == shape:
        return a
    return jnp.zeros(shape, a.dtype).at[: a.shape[0], : a.shape[1]].set(a)


# -----------------------------------------------------------------------------
# Wrapper: mask computation (tiny glue) + tiled pallas_call
# -----------------------------------------------------------------------------
@functools.partial(jax.jit, static_argnames=("k", "tm", "tn", "tk", "compute_dtype"))
def neuron_popup_forward(x, weights, bias, scores, k=0.5,
                         tm=128, tn=128, tk=256, compute_dtype=None):
    """x: [B, In]; weights: [Out, In]; bias, scores: [Out]."""
    out_features, in_features = weights.shape
    B = x.shape[0]
    out_dtype = x.dtype
    if compute_dtype is None:
        compute_dtype = x.dtype  # pass jnp.bfloat16 for MXU-native throughput

    # --- GetNeuronSubset (glue): keep top (k * Out) neurons by |score| -------
    j = int((1.0 - k) * out_features)           # exact PyTorch rounding
    kept = out_features - j
    _, top_idx = jax.lax.top_k(jnp.abs(scores), kept)
    mask = jnp.zeros((out_features,), compute_dtype).at[top_idx].set(1)

    # --- tile sizes: clamp to (padded) problem size, keep (8,128) legality ----
    tm = min(tm, _round_up(B, 8))               # sublane-aligned M tile
    tn = min(tn, _round_up(out_features, 128))  # lane-dense N tile
    tk = min(tk, _round_up(in_features, 128))   # lane-dense K tile

    M = _round_up(B, tm)
    N = _round_up(out_features, tn)
    K = _round_up(in_features, tk)

    # --- padding (zero pads contribute 0 to the accumulation) ----------------
    xp = _pad2d(x.astype(compute_dtype), (M, K))
    wp = _pad2d(weights.astype(compute_dtype), (N, K))   # stays [Out, In]
    bp = _pad2d(bias.astype(compute_dtype).reshape(1, out_features), (1, N))
    mp = _pad2d(mask.reshape(1, out_features), (1, N))

    grid = (M // tm, N // tn, K // tk)

    out = pl.pallas_call(
        neuron_popup_kernel,
        out_shape=jax.ShapeDtypeStruct((M, N), out_dtype),
        grid_spec=pltpu.PrefetchScalarGridSpec(
            num_scalar_prefetch=0,
            grid=grid,
            in_specs=[
                pl.BlockSpec((tm, tk), lambda i, jj, kk: (i, kk)),   # x
                pl.BlockSpec((tn, tk), lambda i, jj, kk: (jj, kk)),  # W [Out, In]
                pl.BlockSpec((1, tn), lambda i, jj, kk: (0, jj)),    # bias
                pl.BlockSpec((1, tn), lambda i, jj, kk: (0, jj)),    # mask
            ],
            out_specs=pl.BlockSpec((tm, tn), lambda i, jj, kk: (i, jj)),
            scratch_shapes=[pltpu.VMEM((tm, tn), jnp.float32)],
        ),
        compiler_params=pltpu.CompilerParams(
            dimension_semantics=("parallel", "parallel", "arbitrary")),
    )(xp, wp, bp, mp)

    # TODO(synk): optional scalar-prefetch column gather to skip pruned
    # output-column blocks entirely (2x weight DMA/MXU at k=0.5) once layers
    # are large enough for the gather bookkeeping to pay off.
    return out[:B, :out_features]


# -----------------------------------------------------------------------------
# Plain-JAX reference (mirrors the PyTorch module exactly)
# -----------------------------------------------------------------------------
def neuron_popup_reference(x, weights, bias, scores, k=0.5):
    out_features = weights.shape[0]
    sabs = jnp.abs(scores)
    idx = jnp.argsort(sabs)                         # ascending, like torch.sort
    j = int((1.0 - k) * out_features)
    mask = jnp.zeros((out_features,), x.dtype).at[idx[j:]].set(1.0)
    pw = weights * mask[:, None]
    pb = bias * mask
    return x @ pw.T + pb


if __name__ == "__main__":
    key = jax.random.PRNGKey(0)
    k_w, k_s, k_x = jax.random.split(key, 3)

    B = 8
    in_features = 32
    out_features = 16
    k_frac = 0.5

    # Deterministic parameter init (mirrors nn.Module __init__ shapes):
    #   weights: kaiming_normal_(fan_in, relu) -> std = sqrt(2 / in_features)
    std = (2.0 / in_features) ** 0.5
    weights = jax.random.normal(k_w, (out_features, in_features), jnp.float32) * std
    bias = jnp.zeros((out_features,), jnp.float32)
    # scores: module inits to ones (all-tied sort); use random values here so
    # the top-k mask is well defined and deterministic.
    scores = jax.random.normal(k_s, (out_features,), jnp.float32)

    x = jax.random.normal(k_x, (B, in_features), jnp.float32)

    out = neuron_popup_forward(x, weights, bias, scores, k=k_frac)
    out = jax.block_until_ready(out)

    ref = neuron_popup_reference(x, weights, bias, scores, k=k_frac)
    assert out.shape == (B, out_features)
    assert jnp.allclose(out, ref, atol=1e-5, rtol=1e-5)

    print("KERNEL_OK")
</pallas_src>

<mosaic_0001>
module attributes {stable_mosaic.version = 11 : i64} {
  func.func @neuron_popup_kernel(%arg0: i32, %arg1: i32, %arg2: i32, %arg3: memref<8x128xf32, #tpu.memory_space<vmem>>, %arg4: memref<128x128xf32, #tpu.memory_space<vmem>>, %arg5: memref<1x128xf32, #tpu.memory_space<vmem>>, %arg6: memref<1x128xf32, #tpu.memory_space<vmem>>, %arg7: memref<8x128xf32, #tpu.memory_space<vmem>>, %arg8: memref<8x128xf32, #tpu.memory_space<vmem>>) attributes {dimension_semantics = [#tpu.dimension_semantics<parallel>, #tpu.dimension_semantics<parallel>, #tpu.dimension_semantics<arbitrary>], iteration_bounds = array<i64: 1, 1, 1>, scalar_prefetch = 0 : i64, scratch_operands = 1 : i64, tpu.core_type = #tpu.core_type<tc>, window_params = [{transform_indices = @transform_0, window_bounds = array<i64: 8, 128>}, {transform_indices = @transform_1, window_bounds = array<i64: 128, 128>}, {transform_indices = @transform_2, window_bounds = array<i64: 1, 128>}, {transform_indices = @transform_3, window_bounds = array<i64: 1, 128>}, {transform_indices = @transform_4, window_bounds = array<i64: 8, 128>}]} {
    %c0_i32 = arith.constant 0 : i32
    %0 = arith.cmpi eq, %arg2, %c0_i32 : i32
    %1 = arith.extui %0 : i1 to i32
    %c0_i32_0 = arith.constant 0 : i32
    %2 = arith.cmpi ne, %1, %c0_i32_0 : i32
    scf.if %2 {
      %cst_10 = arith.constant 0.000000e+00 : f32
      %12 = vector.broadcast %cst_10 : f32 to vector<8x128xf32>
      %c0_11 = arith.constant 0 : index
      %c0_12 = arith.constant 0 : index
      %13 = vector.load %arg8[%c0_11, %c0_12] : memref<8x128xf32, #tpu.memory_space<vmem>>, vector<8x128xf32>
      tpu.vector_store %arg8[%c0_11, %c0_12], %12 {strides = array<i32>} : memref<8x128xf32, #tpu.memory_space<vmem>>, vector<8x128xf32>,
    } else {
    }
    %c0 = arith.constant 0 : index
    %c0_1 = arith.constant 0 : index
    %3 = vector.load %arg8[%c0, %c0_1] : memref<8x128xf32, #tpu.memory_space<vmem>>, vector<8x128xf32>
    %c0_2 = arith.constant 0 : index
    %c0_3 = arith.constant 0 : index
    %4 = vector.load %arg3[%c0_2, %c0_3] : memref<8x128xf32, #tpu.memory_space<vmem>>, vector<8x128xf32>
    %c0_4 = arith.constant 0 : index
    %c0_5 = arith.constant 0 : index
    %5 = vector.load %arg4[%c0_4, %c0_5] : memref<128x128xf32, #tpu.memory_space<vmem>>, vector<128x128xf32>
    %cst = arith.constant dense<0.000000e+00> : vector<8x128xf32>
    %6 = tpu.matmul %4, %5, %cst {dimension_numbers = #tpu.dot_dimension_numbers<[1], [1], [0], [0], [0, 0, 1, 0], [], []>} : vector<8x128xf32>, vector<128x128xf32>, vector<8x128xf32> -> vector<8x128xf32>
    %7 = arith.addf %3, %6 : vector<8x128xf32>
    %c0_6 = arith.constant 0 : index
    %c0_7 = arith.constant 0 : index
    %8 = vector.load %arg8[%c0_6, %c0_7] : memref<8x128xf32, #tpu.memory_space<vmem>>, vector<8x128xf32>
    tpu.vector_store %arg8[%c0_6, %c0_7], %7 {strides = array<i32>} : memref<8x128xf32, #tpu.memory_space<vmem>>, vector<8x128xf32>,
    %c0_i32_8 = arith.constant 0 : i32
    %9 = arith.cmpi eq, %arg2, %c0_i32_8 : i32
    %10 = arith.extui %9 : i1 to i32
    %c0_i32_9 = arith.constant 0 : i32
    %11 = arith.cmpi ne, %10, %c0_i32_9 : i32
    scf.if %11 {
      %c0_10 = arith.constant 0 : index
      %c0_11 = arith.constant 0 : index
      %12 = vector.load %arg8[%c0_10, %c0_11] : memref<8x128xf32, #tpu.memory_space<vmem>>, vector<8x128xf32>
      %c0_12 = arith.constant 0 : index
      %c0_13 = arith.constant 0 : index
      %13 = vector.load %arg5[%c0_12, %c0_13] : memref<1x128xf32, #tpu.memory_space<vmem>>, vector<1x128xf32>
      %14 = vector.broadcast %13 : vector<1x128xf32> to vector<8x128xf32>
      %15 = arith.addf %12, %14 : vector<8x128xf32>
      %c0_14 = arith.constant 0 : index
      %c0_15 = arith.constant 0 : index
      %16 = vector.load %arg6[%c0_14, %c0_15] : memref<1x128xf32, #tpu.memory_space<vmem>>, vector<1x128xf32>
      %17 = vector.broadcast %16 : vector<1x128xf32> to vector<8x128xf32>
      %18 = arith.mulf %15, %17 : vector<8x128xf32>
      %c0_16 = arith.constant 0 : index
      %c0_17 = arith.constant 0 : index
      %19 = vector.load %arg7[%c0_16, %c0_17] : memref<8x128xf32, #tpu.memory_space<vmem>>, vector<8x128xf32>
      tpu.vector_store %arg7[%c0_16, %c0_17], %18 {strides = array<i32>} : memref<8x128xf32, #tpu.memory_space<vmem>>, vector<8x128xf32>,
    } else {
    }
    return
  }
  func.func @transform_0(%arg0: i32, %arg1: i32, %arg2: i32) -> (i32, i32) {
    %c0_i32 = arith.constant 0 : i32
    return %arg0, %arg2 : i32, i32
  }
  func.func @transform_1(%arg0: i32, %arg1: i32, %arg2: i32) -> (i32, i32) {
    %c0_i32 = arith.constant 0 : i32
    return %arg1, %arg2 : i32, i32
  }
  func.func @transform_2(%arg0: i32, %arg1: i32, %arg2: i32) -> (i32, i32) {
    %c0_i32 = arith.constant 0 : i32
    %c0_i32_0 = arith.constant 0 : i32
    return %c0_i32, %arg1 : i32, i32
  }
  func.func @transform_3(%arg0: i32, %arg1: i32, %arg2: i32) -> (i32, i32) {
    %c0_i32 = arith.constant 0 : i32
    %c0_i32_0 = arith.constant 0 : i32
    return %c0_i32, %arg1 : i32, i32
  }
  func.func @transform_4(%arg0: i32, %arg1: i32, %arg2: i32) -> (i32, i32) {
    %c0_i32 = arith.constant 0 : i32
    return %arg0, %arg1 : i32, i32
  }
}

</mosaic_0001>

<llo_original>
// kernel: neuron_popup_forward.1
$region0: #{neuron_popup_forward.1}
  #allocation0 [shape = 'u32[]', space=smem, size = 0x4, offset = 0x4, fixed_abs, tag = 'smem constant byte address 0x4 - core index']
  #allocation1 [shape = 'u32[144,128]{1,0:T(1,128)}', space=vmem, size = 0x12000, scoped, tag = 'internal scratch']
  #allocation2 [shape = 'f32[8,128]{1,0:T(8,128)}', space=vmem, size = 0x1000, scoped, tag = 'scratch operand']
  %s0 = inlined_call_operand.vmem [shape: f32[8,128], index: 0, kind: input, shape index: {}]
  %s1 = inlined_call_operand.vmem [shape: f32[128,128], index: 1, kind: input, shape index: {}]
  %s2 = inlined_call_operand.vmem [shape: f32[1,128], index: 2, kind: input, shape index: {}]
  %s3 = inlined_call_operand.vmem [shape: f32[1,128], index: 3, kind: input, shape index: {}]
  %s4 = inlined_call_operand.hbm [shape: f32[8,128], index: 4, kind: output, shape index: {}]
  %s5 = sld [smem:[#allocation0]]
  $region34: #{neuron_popup_forward.1} parent=0
    _
  %s7 = ssub.s32 1, %s5
  %s8 = scalar_select 0, %s7, %s5
  $region1: #{neuron_popup_forward.1} parent=0
    #allocation3 [shape = 'u8[4096]{0}', space=vmem, size = 0x1000, scoped, tag = 'output window, operand 0, single buffered']
    #allocation4 [shape = 's32[1]{0}', space=sflag, size = 0x4, scoped, tag = 'scoped memory for neuron_popup_forward.1']
    %9 = vsyncpa [#allocation4], 0
    // Predicated region
    $region2: #{neuron_popup_forward.1} parent=1 // pred_check
      _
    $region3: #{neuron_popup_forward.1} parent=1 // pred_check_branch
      %11 = sbr.rel (0) target = $region5
    $region4: #{neuron_popup_forward.1} parent=1 // pred_region
      _
    $region5: #{neuron_popup_forward.1} parent=1 // pred_fallthru
      _
    // Predicated region
    $region6: #{neuron_popup_forward.1} parent=1 // pred_check
      _
    $region7: #{neuron_popup_forward.1} parent=1 // pred_check_branch
      %13 = sbr.rel (0) target = $region9
    $region8: #{neuron_popup_forward.1} parent=1 // pred_region
      _
    $region9: #{neuron_popup_forward.1} parent=1 // pred_fallthru
      _
    // Predicated region
    $region10: #{neuron_popup_forward.1} parent=1 // pred_check
      _
    $region11: #{neuron_popup_forward.1} parent=1 // pred_check_branch
      %15 = sbr.rel (0) target = $region13
    $region12: #{neuron_popup_forward.1} parent=1 // pred_region
      _
    $region13: #{neuron_popup_forward.1} parent=1 // pred_fallthru
      _
    // Predicated region
    $region14: #{neuron_popup_forward.1} parent=1 // pred_check
      _
    $region15: #{neuron_popup_forward.1} parent=1 // pred_check_branch
      %17 = sbr.rel (0) target = $region17
    $region16: #{neuron_popup_forward.1} parent=1 // pred_region
      _
    $region17: #{neuron_popup_forward.1} parent=1 // pred_fallthru
      _
    %p18 = scmp.eq.s32.totalorder 0, 0
    // Predicated region
    $region18: #{neuron_popup_forward.1} parent=1 // pred_check
      %p19 = pneg %p18
    $region19: #{neuron_popup_forward.1} parent=1 // pred_check_branch
      %21 = sbr.rel (%p19) target = $region21
    $region20: #{neuron_popup_forward.1} parent=1 // pred_region
      %22 = vst [vmem:[#allocation2] sm:$0xff] 0.0
    $region21: #{neuron_popup_forward.1} parent=1 // pred_fallthru
      _
    %v23 = vld [vmem:[#allocation2] sm:$0xff]
    %v24 = vld [vmem:[%s0] sm:$0xff]
    %v25 = vld [vmem:[%s1] sm:$0xff]
    %v26 = vld [vmem:[%s1 + $0x8] sm:$0xff]
    %v27 = vld [vmem:[%s1 + $0x10] sm:$0xff]
    %v28 = vld [vmem:[%s1 + $0x18] sm:$0xff]
    %v29 = vld [vmem:[%s1 + $0x20] sm:$0xff]
    %v30 = vld [vmem:[%s1 + $0x28] sm:$0xff]
    %v31 = vld [vmem:[%s1 + $0x30] sm:$0xff]
    %v32 = vld [vmem:[%s1 + $0x38] sm:$0xff]
    %v33 = vld [vmem:[%s1 + $0x40] sm:$0xff]
    %v34 = vld [vmem:[%s1 + $0x48] sm:$0xff]
    %v35 = vld [vmem:[%s1 + $0x50] sm:$0xff]
    %v36 = vld [vmem:[%s1 + $0x58] sm:$0xff]
    %v37 = vld [vmem:[%s1 + $0x60] sm:$0xff]
    %v38 = vld [vmem:[%s1 + $0x68] sm:$0xff]
    %v39 = vld [vmem:[%s1 + $0x70] sm:$0xff]
    %v40 = vld [vmem:[%s1 + $0x78] sm:$0xff]
    %41 = vmatprep.subr.mxu0 0.0
    %42 = vmatpush1.xpose.msra.mxu0 %v25
    %43 = vmatprep.subr.mxu0 0.0
    %44 = vmatpush1.xpose.msra.mxu0 %v26
    %45 = vmatprep.subr.mxu0 0.0
    %46 = vmatpush1.xpose.msra.mxu0 %v27
    %47 = vmatprep.subr.mxu0 0.0
    %48 = vmatpush1.xpose.msra.mxu0 %v28
    %49 = vmatprep.subr.mxu0 0.0
    %50 = vmatpush1.xpose.msra.mxu0 %v29
    %51 = vmatprep.subr.mxu0 0.0
    %52 = vmatpush1.xpose.msra.mxu0 %v30
    %53 = vmatprep.subr.mxu0 0.0
    %54 = vmatpush1.xpose.msra.mxu0 %v31
    %55 = vmatprep.subr.mxu0 0.0
    %56 = vmatpush1.xpose.msra.mxu0 %v32
    %57 = vmatprep.subr.mxu0 0.0
    %58 = vmatpush1.xpose.msra.mxu0 %v33
    %59 = vmatprep.subr.mxu0 0.0
    %60 = vmatpush1.xpose.msra.mxu0 %v34
    %61 = vmatprep.subr.mxu0 0.0
    %62 = vmatpush1.xpose.msra.mxu0 %v35
    %63 = vmatprep.subr.mxu0 0.0
    %64 = vmatpush1.xpose.msra.mxu0 %v36
    %65 = vmatprep.subr.mxu0 0.0
    %66 = vmatpush1.xpose.msra.mxu0 %v37
    %67 = vmatprep.subr.mxu0 0.0
    %68 = vmatpush1.xpose.msra.mxu0 %v38
    %69 = vmatprep.subr.mxu0 0.0
    %70 = vmatpush1.xpose.msra.mxu0 %v39
    %71 = vmatprep.subr.mxu0 0.0
    %72 = vmatpush1.xpose.msra.mxu0 %v40
    %73 = vmatprep.subr.mxu0 0.0
    %74 = vmatpush1.xpose.msra.mxu0 0.0
    %75 = vmatprep.subr.mxu0 0.0
    %76 = vmatpush1.xpose.msra.mxu0 0.0
    %77 = vmatprep.subr.mxu0 0.0
    %78 = vmatpush1.xpose.msra.mxu0 0.0
    %79 = vmatprep.subr.mxu0 0.0
    %80 = vmatpush1.xpose.msra.mxu0 0.0
    %81 = vmatprep.subr.mxu0 0.0
    %82 = vmatpush1.xpose.msra.mxu0 0.0
    %83 = vmatprep.subr.mxu0 0.0
    %84 = vmatpush1.xpose.msra.mxu0 0.0
    %85 = vmatprep.subr.mxu0 0.0
    %86 = vmatpush1.xpose.msra.mxu0 0.0
    %87 = vmatprep.subr.mxu0 0.0
    %88 = vmatpush1.xpose.msra.mxu0 0.0
    %89 = vmatprep.subr.mxu0 0.0
    %90 = vmatpush1.xpose.msra.mxu0 0.0
    %91 = vmatprep.subr.mxu0 0.0
    %92 = vmatpush1.xpose.msra.mxu0 0.0
    %93 = vmatprep.subr.mxu0 0.0
    %94 = vmatpush1.xpose.msra.mxu0 0.0
    %95 = vmatprep.subr.mxu0 0.0
    %96 = vmatpush1.xpose.msra.mxu0 0.0
    %97 = vmatprep.subr.mxu0 0.0
    %98 = vmatpush1.xpose.msra.mxu0 0.0
    %99 = vmatprep.subr.mxu0 0.0
    %100 = vmatpush1.xpose.msra.mxu0 0.0
    %101 = vmatprep.subr.mxu0 0.0
    %102 = vmatpush1.xpose.msra.mxu0 0.0
    %103 = vmatprep.subr.mxu0 0.0
    %104 = vmatpush1.xpose.msra.mxu0 0.0
    %105 = vmatprep.mubr.f32.mxu0 0.0
    %106 = vmatmul.mubr.f32.gmra.mrb[0].mxu0 %v24
    %v107 = vpop.f32.mrb[0].mxu0
    %v108 = vadd.f32 0.0, %v107
    %v109 = vpop.f32.mrb[0].mxu0
    %110 = vdwg.mxu0
    %v111 = vadd.f32 %v23, %v108
    %112 = vst [vmem:[#allocation2] sm:$0xff] %v111
    // Predicated region
    $region22: #{neuron_popup_forward.1} parent=1 // pred_check
      %p113 = pneg %p18
    $region23: #{neuron_popup_forward.1} parent=1 // pred_check_branch
      %115 = sbr.rel (%p113) target = $region25
    $region24: #{neuron_popup_forward.1} parent=1 // pred_region
      %v116 = vld [vmem:[#allocation2] sm:$0xff]
      %v117 = vld [vmem:[%s2] sm:$0x1]
      %v119 = vlaneseq
      %v120 = vshrl.u32 %v119, 7
      %v121 = vsub.s32 0, %v120
      %v122 = vrot.slane %v117, %v121
      %v124 = vadd.f32 %v116, %v122
      %v125 = vld [vmem:[%s3] sm:$0x1]
      %v127 = vlaneseq
      %v128 = vshrl.u32 %v127, 7
      %v129 = vsub.s32 0, %v128
      %v130 = vrot.slane %v125, %v129
      %v132 = vmul.f32 %v124, %v130
      %133 = vst [vmem:[#allocation3] sm:$0xff] %v132
    $region25: #{neuron_popup_forward.1} parent=1 // pred_fallthru
      _
    // Predicated region
    $region26: #{neuron_popup_forward.1} parent=1 // pred_check
      _
    $region27: #{neuron_popup_forward.1} parent=1 // pred_check_branch
      %135 = sbr.rel (0) target = $region29
    $region28: #{neuron_popup_forward.1} parent=1 // pred_region
      %s137 = ssub.s32 128, 128
      %138 = vsyncadd [#allocation4], %s137
      %s140 = sshll.u32 [#allocation3], 4
      %s141 = int_to_ptr.vmem [resolvable:$true] %s140
      %143 = dma.vmem_to_hbm [thread:$0]  %s141, 128, %s4, [#allocation4]
    $region29: #{neuron_popup_forward.1} parent=1 // pred_fallthru
      _
    // Predicated region
    $region30: #{neuron_popup_forward.1} parent=1 // pred_check
      _
    $region31: #{neuron_popup_forward.1} parent=1 // pred_check_branch
      %145 = sbr.rel (0) target = $region33
    $region32: #{neuron_popup_forward.1} parent=1 // pred_region
      %146 = dma.done [#allocation4], 128
    $region33: #{neuron_popup_forward.1} parent=1 // pred_fallthru
      _
    %147 = vsyncpa [#allocation4], 1

</llo_original>
